<compile_context>
chip_gen: v6e
topology: v6e:2x2x1
jax: 0.10.0
libtpu: 0.0.40
codegen_flags: <defaults>
</compile_context>

<pallas_src>
import functools
import math

import jax
import jax.numpy as jnp
from jax import lax
from jax.experimental import pallas as pl
from jax.experimental.pallas import tpu as pltpu


def _round_up(x, m):
    return ((x + m - 1) // m) * m


def _pick_tile(size, align, cap):
    """Largest tile <= cap that is a multiple of `align` and evenly tiles round_up(size, align)."""
    r = _round_up(size, align)
    if r <= cap:
        return r
    for cand in range(cap, align - 1, -align):
        if r % cand == 0:
            return cand
    return align


def _tpu_vmem_bytes():
    # Per-chip budget (v5e/v6e: 128 MiB, v7x: 64 MiB). Conservative fallback if the query fails.
    try:
        return int(getattr(pltpu.get_tpu_info(), "vmem_capacity_bytes"))
    except Exception:
        return 64 * 1024 * 1024


_VMEM_CAP = _tpu_vmem_bytes()
# per-generation matmul K-tile cap & scoped-VMEM budget (deeper pipeline on v5e/v6e, tighter v7x)
_TK_CAP = 2048 if _VMEM_CAP >= 100 * 1024 * 1024 else 1024
_MM_VMEM_LIMIT = min(64 * 1024 * 1024, max(32 * 1024 * 1024, _VMEM_CAP // 2))
# GroupNorm: single-block path only while the f32 working block stays comfortably inside VMEM
_GN_SINGLE_BLOCK_BYTES = min(8 * 1024 * 1024, _VMEM_CAP // 16)


# ----------------------------------------------------------------------------
# Tiled matmul + bias (+ fused SiLU / residual-add epilogues), bf16 in / bf16 out
# ----------------------------------------------------------------------------

def _mm_kernel(a_ref, b_ref, bias_ref, *rest, silu_in, silu_out, has_add, n_k):
    if has_add:
        add_ref, o_ref, acc_ref = rest
    else:
        o_ref, acc_ref = rest
        add_ref = None

    @pl.when(pl.program_id(2) == 0)
    def _init():
        acc_ref[...] = jnp.zeros_like(acc_ref)

    a = a_ref[...]
    if silu_in:
        af = a.astype(jnp.float32)
        a = (af * jax.nn.sigmoid(af)).astype(a_ref.dtype)
    acc_ref[...] += jnp.dot(a, b_ref[...], preferred_element_type=jnp.float32)

    @pl.when(pl.program_id(2) == n_k - 1)
    def _finalize():
        out = acc_ref[...] + bias_ref[...]
        if has_add:
            out = out + add_ref[...].astype(jnp.float32)     # bf16 add operand, upcast here
        if silu_out:
            out = out * jax.nn.sigmoid(out)                  # f32 EUP sigmoid
        o_ref[...] = out.astype(o_ref.dtype)


def matmul_bias(a, b, bias, add=None, *, silu_in=False, silu_out=False,
                out_dtype=jnp.bfloat16):
    """a: (M, K), b: (K, N), bias: (N,), optional add: (M, N). Returns `out_dtype` (M, N).

    Operands/epilogue-add are bf16 (f32 accumulation on the MXU); M is padded to a 16-aligned
    tile (bf16 sublane packing), N to a multiple of 128 (lane-dense stores), K to the K tile.
    Grid = (M/tm, N/tn, K/tk): M/N "parallel" (megacore), K "arbitrary" (reduction, last).
    """
    M, K = a.shape
    Kb, N = b.shape
    assert K == Kb and bias.shape == (N,)

    tm = _pick_tile(M, 16, 256)
    tn = _pick_tile(N, 128, 256)
    tk = _pick_tile(K, 128, _TK_CAP)
    Mp, Np, Kp = _round_up(M, tm), _round_up(N, tn), _round_up(K, tk)

    a_p = a if a.dtype == jnp.bfloat16 else a.astype(jnp.bfloat16)
    if (Mp, Kp) != (M, K):
        a_p = jnp.pad(a_p, ((0, Mp - M), (0, Kp - K)))
    b_p = b if b.dtype == jnp.bfloat16 else b.astype(jnp.bfloat16)
    if (Kp, Np) != (K, N):
        b_p = jnp.pad(b_p, ((0, Kp - K), (0, Np - N)))
    bias_p = bias.astype(jnp.float32).reshape(1, N)
    if Np != N:
        bias_p = jnp.pad(bias_p, ((0, 0), (0, Np - N)))

    operands = [a_p, b_p, bias_p]
    in_specs = [
        pl.BlockSpec((tm, tk), lambda i, j, k: (i, k)),
        pl.BlockSpec((tk, tn), lambda i, j, k: (k, j)),
        pl.BlockSpec((1, tn), lambda i, j, k: (0, j)),
    ]
    has_add = add is not None
    if has_add:
        add_p = add if add.dtype == jnp.bfloat16 else add.astype(jnp.bfloat16)
        if (Mp, Np) != (M, N):
            add_p = jnp.pad(add_p, ((0, Mp - M), (0, Np - N)))
        operands.append(add_p)
        in_specs.append(pl.BlockSpec((tm, tn), lambda i, j, k: (i, j)))

    grid = (Mp // tm, Np // tn, Kp // tk)
    kern = functools.partial(_mm_kernel, silu_in=silu_in, silu_out=silu_out,
                             has_add=has_add, n_k=grid[2])
    out = pl.pallas_call(
        kern,
        out_shape=jax.ShapeDtypeStruct((Mp, Np), out_dtype),
        grid=grid,
        in_specs=in_specs,
        out_specs=pl.BlockSpec((tm, tn), lambda i, j, k: (i, j)),
        scratch_shapes=[pltpu.VMEM((tm, tn), jnp.float32)],
        compiler_params=pltpu.CompilerParams(
            dimension_semantics=("parallel", "parallel", "arbitrary"),
            vmem_limit_bytes=_MM_VMEM_LIMIT),
    )(*operands)
    if (Mp, Np) != (M, N):
        out = out[:M, :N]
    return out


# ----------------------------------------------------------------------------
# GroupNorm(32) channels-last (+ fused SiLU / timestep-embedding add), bf16 in/out
# ----------------------------------------------------------------------------

def _gn_single_kernel(x_ref, g_ref, b_ref, *rest, eps, num_groups, inv_n, silu, has_emb):
    if has_emb:
        emb_ref, o_ref = rest
    else:
        (o_ref,) = rest
        emb_ref = None

    x = x_ref[0].astype(jnp.float32)                       # (T, C)
    if has_emb:
        x = x + emb_ref[0].astype(jnp.float32)             # (1, C) broadcast over T
    C = x.shape[1]
    G = num_groups
    cg = C // G

    oh_cg = (lax.broadcasted_iota(jnp.int32, (C, G), 0) // cg
             == lax.broadcasted_iota(jnp.int32, (C, G), 1)).astype(jnp.float32)       # (C, G)
    oh_gc = (lax.broadcasted_iota(jnp.int32, (G, C), 0)
             == lax.broadcasted_iota(jnp.int32, (G, C), 1) // cg).astype(jnp.float32)  # (G, C)

    # true two-pass statistics (mean first, then E[(x-mean)^2]) -- no E[x^2]-E[x]^2 cancellation
    cs = jnp.sum(x, axis=0, keepdims=True)                                              # (1, C)
    gmean = jnp.dot(cs, oh_cg, preferred_element_type=jnp.float32) * inv_n              # (1, G)
    mean_c = jnp.dot(gmean, oh_gc, preferred_element_type=jnp.float32)                  # (1, C)
    d = x - mean_c
    csq = jnp.sum(d * d, axis=0, keepdims=True)
    gvar = jnp.dot(csq, oh_cg, preferred_element_type=jnp.float32) * inv_n
    var_c = jnp.dot(gvar, oh_gc, preferred_element_type=jnp.float32)

    out = d * lax.rsqrt(var_c + eps) * g_ref[...] + b_ref[...]
    if silu:
        out = out * jax.nn.sigmoid(out)
    o_ref[0] = out.astype(o_ref.dtype)


def _gn_stats_kernel(x_ref, *rest, num_groups, inv_n, n_t, has_emb):
    if has_emb:
        emb_ref, o_ref, s_ref, ss_ref = rest
    else:
        o_ref, s_ref, ss_ref = rest
        emb_ref = None

    @pl.when(pl.program_id(1) == 0)
    def _init():
        s_ref[...] = jnp.zeros_like(s_ref)
        ss_ref[...] = jnp.zeros_like(ss_ref)

    x = x_ref[0].astype(jnp.float32)
    if has_emb:
        x = x + emb_ref[0].astype(jnp.float32)
    s_ref[...] += jnp.sum(x, axis=0, keepdims=True)
    ss_ref[...] += jnp.sum(x * x, axis=0, keepdims=True)

    @pl.when(pl.program_id(1) == n_t - 1)
    def _finalize():
        C = s_ref.shape[1]
        G = num_groups
        cg = C // G
        oh_cg = (lax.broadcasted_iota(jnp.int32, (C, G), 0) // cg
                 == lax.broadcasted_iota(jnp.int32, (C, G), 1)).astype(jnp.float32)
        gmean = jnp.dot(s_ref[...], oh_cg, preferred_element_type=jnp.float32) * inv_n
        gsq = jnp.dot(ss_ref[...], oh_cg, preferred_element_type=jnp.float32) * inv_n
        gvar = jnp.maximum(gsq - gmean * gmean, 0.0)
        o_ref[0] = jnp.concatenate([gmean, gvar], axis=0)   # (2, G)


def _gn_norm_kernel(x_ref, st_ref, g_ref, b_ref, *rest, eps, num_groups, silu, has_emb):
    if has_emb:
        emb_ref, o_ref = rest
    else:
        (o_ref,) = rest
        emb_ref = None

    x = x_ref[0].astype(jnp.float32)
    if has_emb:
        x = x + emb_ref[0].astype(jnp.float32)
    C = x.shape[1]
    G = num_groups
    cg = C // G
    oh_gc = (lax.broadcasted_iota(jnp.int32, (G, C), 0)
             == lax.broadcasted_iota(jnp.int32, (G, C), 1) // cg).astype(jnp.float32)
    st = st_ref[0]                                                        # (2, G)
    mean_c = jnp.dot(st[0:1, :], oh_gc, preferred_element_type=jnp.float32)
    var_c = jnp.dot(st[1:2, :], oh_gc, preferred_element_type=jnp.float32)
    out = (x - mean_c) * lax.rsqrt(var_c + eps) * g_ref[...] + b_ref[...]
    if silu:
        out = out * jax.nn.sigmoid(out)
    o_ref[0] = out.astype(o_ref.dtype)


def group_norm(x, gamma, beta, *, num_groups=32, eps=1e-5, silu=False, emb=None, t_tile=None):
    """GroupNorm32 on channels-last x: (N, T, C) bf16/f32 -> bf16; gamma/beta: (C,).

    Optional `emb` (N, C) is added (broadcast over T) *before* the statistics, fusing the
    ResBlock timestep-embedding add into the norm kernel. Small T: one (T, C) block per batch
    element. Large T (v7x VMEM safety): two-pass T-tiled pipeline (stats pass + normalize pass).
    """
    N, T, C = x.shape
    g2 = gamma.reshape(1, C).astype(jnp.float32)
    b2 = beta.reshape(1, C).astype(jnp.float32)
    has_emb = emb is not None
    emb3 = None if emb is None else emb.reshape(N, 1, C)
    inv_n = 1.0 / float((C // num_groups) * T)
    out_dtype = jnp.bfloat16

    if t_tile is None:
        if T * C * 4 <= _GN_SINGLE_BLOCK_BYTES or (T % 8 != 0):
            t_tile = T
        else:
            t_tile = _pick_tile(T, 8, 2048)

    if t_tile >= T:
        operands = [x, g2, b2]
        in_specs = [pl.BlockSpec((1, T, C), lambda n: (n, 0, 0)),
                    pl.BlockSpec((1, C), lambda n: (0, 0)),
                    pl.BlockSpec((1, C), lambda n: (0, 0))]
        if has_emb:
            operands.append(emb3)
            in_specs.append(pl.BlockSpec((1, 1, C), lambda n: (n, 0, 0)))
        kern = functools.partial(_gn_single_kernel, eps=eps, num_groups=num_groups,
                                 inv_n=inv_n, silu=silu, has_emb=has_emb)
        return pl.pallas_call(
            kern,
            out_shape=jax.ShapeDtypeStruct((N, T, C), out_dtype),
            grid=(N,),
            in_specs=in_specs,
            out_specs=pl.BlockSpec((1, T, C), lambda n: (n, 0, 0)),
            compiler_params=pltpu.CompilerParams(dimension_semantics=("parallel",)),
        )(*operands)

    # ---- T-tiled two-pass path ----
    n_t = T // t_tile

    operands = [x]
    in_specs = [pl.BlockSpec((1, t_tile, C), lambda n, t: (n, t, 0))]
    if has_emb:
        operands.append(emb3)
        in_specs.append(pl.BlockSpec((1, 1, C), lambda n, t: (n, 0, 0)))
    stats = pl.pallas_call(
        functools.partial(_gn_stats_kernel, num_groups=num_groups, inv_n=inv_n,
                          n_t=n_t, has_emb=has_emb),
        out_shape=jax.ShapeDtypeStruct((N, 2, num_groups), jnp.float32),
        grid=(N, n_t),
        in_specs=in_specs,
        out_specs=pl.BlockSpec((1, 2, num_groups), lambda n, t: (n, 0, 0)),
        scratch_shapes=[pltpu.VMEM((1, C), jnp.float32),
                        pltpu.VMEM((1, C), jnp.float32)],
        compiler_params=pltpu.CompilerParams(dimension_semantics=("parallel", "arbitrary")),
    )(*operands)

    operands = [x, stats, g2, b2]
    in_specs = [pl.BlockSpec((1, t_tile, C), lambda n, t: (n, t, 0)),
                pl.BlockSpec((1, 2, num_groups), lambda n, t: (n, 0, 0)),
                pl.BlockSpec((1, C), lambda n, t: (0, 0)),
                pl.BlockSpec((1, C), lambda n, t: (0, 0))]
    if has_emb:
        operands.append(emb3)
        in_specs.append(pl.BlockSpec((1, 1, C), lambda n, t: (n, 0, 0)))
    return pl.pallas_call(
        functools.partial(_gn_norm_kernel, eps=eps, num_groups=num_groups,
                          silu=silu, has_emb=has_emb),
        out_shape=jax.ShapeDtypeStruct((N, T, C), out_dtype),
        grid=(N, n_t),
        in_specs=in_specs,
        out_specs=pl.BlockSpec((1, t_tile, C), lambda n, t: (n, t, 0)),
        compiler_params=pltpu.CompilerParams(dimension_semantics=("parallel", "parallel")),
    )(*operands)


# ----------------------------------------------------------------------------
# Flash-style single-head QKV attention (QKVAttentionLegacy semantics)
# Consumes the fused (N, T, 3C) qkv tensor directly; q/k/v sliced in-kernel (VMEM, no HBM copies).
# ----------------------------------------------------------------------------

def _flash_attn_kernel(qq_ref, qkv_ref, o_ref, m_ref, l_ref, acc_ref, *, C, scale, n_kv):
    ki = pl.program_id(2)

    @pl.when(ki == 0)
    def _init():
        m_ref[...] = jnp.full_like(m_ref, -jnp.inf)
        l_ref[...] = jnp.zeros_like(l_ref)
        acc_ref[...] = jnp.zeros_like(acc_ref)

    qrow = qq_ref[0]                          # (tq, 3C)   bf16 (only q columns used)
    kvrow = qkv_ref[0]                        # (tkv, 3C)  bf16
    q = qrow[:, :C]
    k = kvrow[:, C:2 * C]
    v = kvrow[:, 2 * C:3 * C]

    # scores[t, s] = scale^2 * sum_c q[t,c] k[s,c]  (scale applied in f32 after the MXU matmul,
    # matching QKVAttentionLegacy's q*scale, k*scale up to rounding)
    s = lax.dot_general(q, k, (((1,), (1,)), ((), ())),
                        preferred_element_type=jnp.float32) * (scale * scale)   # (tq, tkv)

    m_prev = m_ref[0]                                           # (tq, 1)
    m_new = jnp.maximum(m_prev, jnp.max(s, axis=-1, keepdims=True))
    alpha = jnp.exp(m_prev - m_new)
    p = jnp.exp(s - m_new)
    l_ref[0] = alpha * l_ref[0] + jnp.sum(p, axis=-1, keepdims=True)
    acc_ref[0] = alpha * acc_ref[0] + jnp.dot(p.astype(jnp.bfloat16), v,
                                              preferred_element_type=jnp.float32)
    m_ref[0] = m_new

    @pl.when(ki == n_kv - 1)
    def _finalize():
        o_ref[0] = (acc_ref[0] * pl.reciprocal(l_ref[0], approx=True)).astype(o_ref.dtype)


def qkv_attention(qkv, channels, *, tq=None, tkv=None):
    """qkv: (N, T, 3C) fused projection (channels-last, single head). Returns bf16 (N, T, C)."""
    N, T, C3 = qkv.shape
    C = channels
    assert C3 == 3 * C
    qkv = qkv if qkv.dtype == jnp.bfloat16 else qkv.astype(jnp.bfloat16)

    if T % 8 != 0:
        tq_d = tkv_d = T
    else:
        tq_d = _pick_tile(T, 8, 256)
        tkv_d = _pick_tile(T, 8, 512)
    tq = tq_d if tq is None else tq
    tkv = tkv_d if tkv is None else tkv
    assert T % tq == 0 and T % tkv == 0
    n_q, n_kv = T // tq, T // tkv
    scale = 1.0 / math.sqrt(math.sqrt(C))

    kern = functools.partial(_flash_attn_kernel, C=C, scale=scale, n_kv=n_kv)
    return pl.pallas_call(
        kern,
        out_shape=jax.ShapeDtypeStruct((N, T, C), jnp.bfloat16),
        grid=(N, n_q, n_kv),
        # the same fused qkv array feeds both operands; the q-rows block index is constant along
        # the kv axis, so it is fetched once per (n, q-tile) (Pallas skips unchanged-block DMA).
        in_specs=[pl.BlockSpec((1, tq, C3), lambda n, qi, ki: (n, qi, 0)),
                  pl.BlockSpec((1, tkv, C3), lambda n, qi, ki: (n, ki, 0))],
        out_specs=pl.BlockSpec((1, tq, C), lambda n, qi, ki: (n, qi, 0)),
        scratch_shapes=[pltpu.VMEM((1, tq, 1), jnp.float32),
                        pltpu.VMEM((1, tq, 1), jnp.float32),
                        pltpu.VMEM((1, tq, C), jnp.float32)],
        compiler_params=pltpu.CompilerParams(
            dimension_semantics=("parallel", "parallel", "arbitrary")),
    )(qkv, qkv)


# ----------------------------------------------------------------------------
# Conv / linear wrappers (channels-last; matmuls run in the Pallas kernel)
# ----------------------------------------------------------------------------

def conv2d(x, w, b, *, stride=1, padding=1, add=None):
    """Channels-last conv. x: (N, H, W, Cin); w: (Cout, Cin, kh, kw) (PyTorch layout).
    Patch matrix built directly in bf16 with the conv padding folded in (single pass; no f32
    im2col / separate cast / separate pad round trips). Optional `add` (N, Ho, Wo, Cout) is
    fused into the matmul epilogue (residual/skip)."""
    N, H, W, Cin = x.shape
    Cout, _, kh, kw = w.shape
    Ho = (H + 2 * padding - kh) // stride + 1
    Wo = (W + 2 * padding - kw) // stride + 1
    xb = x if x.dtype == jnp.bfloat16 else x.astype(jnp.bfloat16)
    xp = jnp.pad(xb, ((0, 0), (padding, padding), (padding, padding), (0, 0))) if padding else xb
    # TODO(synk): gather the kh*kw taps inside the matmul kernel (x kept in HBM, K grid axis over
    # taps) so the 9x patch matrix is never materialized in HBM at all.
    patches = [xp[:, i:i + stride * Ho:stride, j:j + stride * Wo:stride, :]
               for i in range(kh) for j in range(kw)]
    p = jnp.stack(patches, axis=3).reshape(N * Ho * Wo, kh * kw * Cin)
    wmat = w.transpose(2, 3, 1, 0).reshape(kh * kw * Cin, Cout)
    add2 = None if add is None else add.reshape(N * Ho * Wo, Cout)
    out = matmul_bias(p, wmat, b, add=add2)
    return out.reshape(N, Ho, Wo, Cout)


def conv2d_upsample2x(x, w, b):
    """3x3 / stride-1 / pad-1 conv applied to nearest-x2-upsampled x, with the upsample folded
    into the im2col gather (no 4x-repeated intermediate activation in HBM)."""
    N, H, W, Cin = x.shape
    Cout, _, kh, kw = w.shape
    Ho, Wo = 2 * H, 2 * W
    xb = x if x.dtype == jnp.bfloat16 else x.astype(jnp.bfloat16)
    xp = jnp.pad(xb, ((0, 0), (1, 1), (1, 1), (0, 0)))
    patches = []
    for di in range(kh):
        ih = (jnp.arange(Ho) + di - 1) // 2 + 1          # index into padded H (zeros at borders)
        for dj in range(kw):
            iw = (jnp.arange(Wo) + dj - 1) // 2 + 1
            patches.append(xp[:, ih][:, :, iw, :])
    p = jnp.stack(patches, axis=3).reshape(N * Ho * Wo, kh * kw * Cin)
    wmat = w.transpose(2, 3, 1, 0).reshape(kh * kw * Cin, Cout)
    out = matmul_bias(p, wmat, b)
    return out.reshape(N, Ho, Wo, Cout)


def conv1x1(x, w, b, add=None):
    """1x1 conv on channels-last x: (..., Cin); w: (Cout, Cin, *ones)."""
    Cout, Cin = w.shape[0], w.shape[1]
    xm = x.reshape(-1, x.shape[-1])
    add2 = None if add is None else add.reshape(-1, Cout)
    out = matmul_bias(xm, w.reshape(Cout, Cin).T, b, add=add2)
    return out.reshape(x.shape[:-1] + (Cout,))


def linear(x, p, *, silu_in=False, silu_out=False):
    return matmul_bias(x, p['w'].T, p['b'], silu_in=silu_in, silu_out=silu_out)


# ----------------------------------------------------------------------------
# Model sub-blocks
# ----------------------------------------------------------------------------

def timestep_embedding(timesteps, dim, max_period=10000):
    half = dim // 2
    freqs = jnp.exp(-math.log(max_period) * jnp.arange(half, dtype=jnp.float32) / half)
    args = timesteps.astype(jnp.float32)[:, None] * freqs[None]
    emb = jnp.concatenate([jnp.cos(args), jnp.sin(args)], axis=-1)
    if dim % 2:
        emb = jnp.concatenate([emb, jnp.zeros_like(emb[:, :1])], axis=-1)
    return emb


def time_mlp(params, x):
    h = linear(x, params[0], silu_out=True)     # linear -> SiLU (fused)
    return linear(h, params[1])                 # -> linear


def resblock_apply(p, x, emb):
    N, H, W, C = x.shape
    T = H * W
    h = group_norm(x.reshape(N, T, C), p['in_norm']['g'], p['in_norm']['b'], silu=True)
    h = conv2d(h.reshape(N, H, W, C), p['in_conv']['w'], p['in_conv']['b'])
    Cout = h.shape[-1]
    emb_out = linear(emb, p['emb'], silu_in=True)                   # SiLU -> linear (fused)
    # timestep-embedding add + SiLU fused into the out-norm kernel; dropout p=0 -> identity
    h2 = group_norm(h.reshape(N, T, Cout), p['out_norm']['g'], p['out_norm']['b'],
                    silu=True, emb=emb_out)
    xs = conv1x1(x, p['skip']['w'], p['skip']['b']) if 'skip' in p else x
    # skip-connection add fused into the out-conv matmul epilogue
    return conv2d(h2.reshape(N, H, W, Cout), p['out_conv']['w'], p['out_conv']['b'], add=xs)


def attention_block_apply(p, x):
    # num_heads = 1 (QKVAttentionLegacy)
    N, H, W, C = x.shape
    T = H * W
    xf = x.reshape(N, T, C)
    hn = group_norm(xf, p['norm']['g'], p['norm']['b'], silu=False)
    qkv = conv1x1(hn, p['qkv']['w'], p['qkv']['b'])                 # (N, T, 3C) fused layout
    a = qkv_attention(qkv, C)
    # residual add fused into the proj matmul epilogue
    h = conv1x1(a, p['proj']['w'], p['proj']['b'], add=xf)
    return h.reshape(N, H, W, C)


def apply_layer(kind, p, h, emb):
    if kind == 'conv':
        return conv2d(h, p['w'], p['b'])
    if kind == 'down':
        return conv2d(h, p['w'], p['b'], stride=2)
    if kind == 'up':
        return conv2d_upsample2x(h, p['w'], p['b'])
    if kind == 'res':
        return resblock_apply(p, h, emb)
    if kind == 'attn':
        return attention_block_apply(p, h)
    raise ValueError(kind)


# ----------------------------------------------------------------------------
# Deterministic parameter construction (shapes mirror UNetModel.__init__)
# ----------------------------------------------------------------------------

class Init:
    def __init__(self, key):
        self.key = key

    def next(self):
        self.key, sub = jax.random.split(self.key)
        return sub


def conv_p(init, cin, cout, k):
    scale = 1.0 / math.sqrt(cin * k * k)
    return {'w': scale * jax.random.normal(init.next(), (cout, cin, k, k), jnp.float32),
            'b': scale * jax.random.normal(init.next(), (cout,), jnp.float32)}


def zero_conv_p(cin, cout, k):
    # zero_module(...) in the reference: weights and bias start at zero.
    return {'w': jnp.zeros((cout, cin, k, k), jnp.float32),
            'b': jnp.zeros((cout,), jnp.float32)}


def lin_p(init, din, dout):
    scale = 1.0 / math.sqrt(din)
    return {'w': scale * jax.random.normal(init.next(), (dout, din), jnp.float32),
            'b': scale * jax.random.normal(init.next(), (dout,), jnp.float32)}


def norm_p(init, c):
    return {'g': 1.0 + 0.1 * jax.random.normal(init.next(), (c,), jnp.float32),
            'b': 0.1 * jax.random.normal(init.next(), (c,), jnp.float32)}


def resblock_p(init, cin, emb_ch, cout):
    p = {'in_norm': norm_p(init, cin),
         'in_conv': conv_p(init, cin, cout, 3),
         'emb': lin_p(init, emb_ch, cout),
         'out_norm': norm_p(init, cout),
         'out_conv': zero_conv_p(cout, cout, 3)}    # zero_module, as in the reference
    if cin != cout:
        p['skip'] = conv_p(init, cin, cout, 1)
    return p


def attn_p(init, c):
    return {'norm': norm_p(init, c),
            'qkv': conv_p(init, c, 3 * c, 1),
            'proj': zero_conv_p(c, c, 1)}           # zero_module, as in the reference


def build_unet(init, image_size, in_channels, model_channels, out_channels,
               num_res_blocks, attention_resolutions, channel_mult):
    cfg = {'model_channels_orig': model_channels}
    time_embed_dim = model_channels * 4
    cfg['time_embed_t_v'] = [lin_p(init, model_channels, time_embed_dim),
                             lin_p(init, time_embed_dim, time_embed_dim)]
    cfg['time_embed_t'] = [lin_p(init, model_channels, time_embed_dim),
                           lin_p(init, time_embed_dim, time_embed_dim)]
    # internal doubling (v / xt concatenation)
    time_embed_dim *= 2
    model_channels *= 2
    in_channels *= 2
    out_channels *= 2

    ch = input_ch = int(channel_mult[0] * model_channels)
    input_blocks = [[('conv', conv_p(init, in_channels, ch, 3))]]
    input_block_chans = [ch]
    ds = 1
    for level, mult in enumerate(channel_mult):
        for _ in range(num_res_blocks):
            layers = [('res', resblock_p(init, ch, time_embed_dim, int(mult * model_channels)))]
            ch = int(mult * model_channels)
            if ds in attention_resolutions:
                layers.append(('attn', attn_p(init, ch)))
            input_blocks.append(layers)
            input_block_chans.append(ch)
        if level != len(channel_mult) - 1:
            input_blocks.append([('down', conv_p(init, ch, ch, 3))])
            input_block_chans.append(ch)
            ds *= 2
    cfg['input_blocks'] = input_blocks

    cfg['middle'] = [('res', resblock_p(init, ch, time_embed_dim, ch)),
                     ('attn', attn_p(init, ch)),
                     ('res', resblock_p(init, ch, time_embed_dim, ch))]

    output_blocks = []
    for level, mult in list(enumerate(channel_mult))[::-1]:
        for i in range(num_res_blocks + 1):
            ich = input_block_chans.pop()
            layers = [('res', resblock_p(init, ch + ich, time_embed_dim, int(model_channels * mult)))]
            ch = int(model_channels * mult)
            if ds in attention_resolutions:
                layers.append(('attn', attn_p(init, ch)))
            if level and i == num_res_blocks:
                layers.append(('up', conv_p(init, ch, ch, 3)))
                ds //= 2
            output_blocks.append(layers)
    cfg['output_blocks'] = output_blocks

    cfg['out_norm'] = norm_p(init, ch)
    cfg['out_conv'] = zero_conv_p(input_ch, out_channels, 3)   # zero_module, as in the reference
    return cfg


# ----------------------------------------------------------------------------
# Full forward (UNetModel.forward): returns the `v` half of the output
# ----------------------------------------------------------------------------

def unet_forward(cfg, t_v, v, t, xt):
    mc = cfg['model_channels_orig']
    emb_tv = time_mlp(cfg['time_embed_t_v'], timestep_embedding(t_v, mc))
    emb_t = time_mlp(cfg['time_embed_t'], timestep_embedding(t, mc))
    emb = jnp.concatenate([emb_tv, emb_t], axis=1)

    # NCHW -> channels-last + bf16 once at the model boundary
    h = jnp.concatenate([v, xt], axis=1).transpose(0, 2, 3, 1).astype(jnp.bfloat16)
    hs = []
    for block in cfg['input_blocks']:
        for kind, p in block:
            h = apply_layer(kind, p, h, emb)
        hs.append(h)
    for kind, p in cfg['middle']:
        h = apply_layer(kind, p, h, emb)
    for block in cfg['output_blocks']:
        h = jnp.concatenate([h, hs.pop()], axis=-1)
        for kind, p in block:
            h = apply_layer(kind, p, h, emb)

    N, H, W, C = h.shape
    h = group_norm(h.reshape(N, H * W, C), cfg['out_norm']['g'], cfg['out_norm']['b'],
                   silu=True).reshape(N, H, W, C)
    h = conv2d(h, cfg['out_conv']['w'], cfg['out_conv']['b'])
    h = h.astype(jnp.float32).transpose(0, 3, 1, 2)        # back to NCHW / f32 at the boundary
    v_out, _xt_out = jnp.split(h, 2, axis=1)
    return v_out


# ----------------------------------------------------------------------------
# Small on-device self-tests for the tiled kernels (loose tolerances, bf16 rounding)
# ----------------------------------------------------------------------------

def _rel_err(got, want):
    return float(jnp.linalg.norm(got - want) / (jnp.linalg.norm(want) + 1e-12))


def _self_test():
    # flash attention (forced multi-tile Q/KV grid) vs pure-JAX reference
    key = jax.random.PRNGKey(1)
    N, T, C = 2, 64, 64
    qkv = jax.random.normal(key, (N, T, 3 * C), jnp.float32).astype(jnp.bfloat16)
    got = qkv_attention(qkv, C, tq=16, tkv=16).astype(jnp.float32)
    scale = 1.0 / math.sqrt(math.sqrt(C))
    qf = qkv[..., :C].astype(jnp.float32) * scale
    kf = qkv[..., C:2 * C].astype(jnp.float32) * scale
    vf = qkv[..., 2 * C:].astype(jnp.float32)
    p = jax.nn.softmax(jnp.einsum('ntc,nsc->nts', qf, kf), axis=-1)
    want = jnp.einsum('nts,nsc->ntc', p, vf)
    err = _rel_err(got, want)
    assert err < 0.1, f"attention self-test rel err {err}"

    # T-tiled two-pass GroupNorm (+SiLU, +emb) vs pure-JAX reference
    k2, k3, k4, k5 = jax.random.split(jax.random.PRNGKey(2), 4)
    N, T, C, G = 2, 128, 64, 32
    x = jax.random.normal(k2, (N, T, C), jnp.float32)
    g = 1.0 + 0.1 * jax.random.normal(k3, (C,), jnp.float32)
    b = 0.1 * jax.random.normal(k4, (C,), jnp.float32)
    e = jax.random.normal(k5, (N, C), jnp.float32)
    got = group_norm(x.astype(jnp.bfloat16), g, b, silu=True,
                     emb=e.astype(jnp.bfloat16), t_tile=32).astype(jnp.float32)
    xr = x.astype(jnp.bfloat16).astype(jnp.float32) + e.astype(jnp.bfloat16).astype(jnp.float32)[:, None, :]
    xg = xr.reshape(N, T, G, C // G)
    mean = xg.mean(axis=(1, 3), keepdims=True)
    var = ((xg - mean) ** 2).mean(axis=(1, 3), keepdims=True)
    y = ((xg - mean) / jnp.sqrt(var + 1e-5)).reshape(N, T, C) * g + b
    want = y * jax.nn.sigmoid(y)
    err = _rel_err(got, want)
    assert err < 0.1, f"groupnorm self-test rel err {err}"


# ----------------------------------------------------------------------------
# Main
# ----------------------------------------------------------------------------

if __name__ == "__main__":
    _self_test()

    key = jax.random.PRNGKey(0)
    k_params, k_v, k_xt, k_tv, k_t = jax.random.split(key, 5)

    # small config: image_size=8, in_channels=2, model_channels=16, out_channels=2,
    #               num_res_blocks=1, attention_resolutions=(2,), channel_mult=(1, 2),
    #               num_heads=1, use_scale_shift_norm=False, resblock_updown=False
    N = 2
    image_size = 8
    in_channels = 2
    cfg = build_unet(
        Init(k_params),
        image_size=image_size,
        in_channels=in_channels,
        model_channels=16,
        out_channels=2,
        num_res_blocks=1,
        attention_resolutions=(2,),
        channel_mult=(1, 2),
    )

    v = jax.random.normal(k_v, (N, in_channels, image_size, image_size), jnp.float32)
    xt = jax.random.normal(k_xt, (N, in_channels, image_size, image_size), jnp.float32)
    t_v = jax.random.uniform(k_tv, (N,), jnp.float32, 0.0, 100.0)
    t = jax.random.uniform(k_t, (N,), jnp.float32, 0.0, 100.0)

    fwd = jax.jit(lambda t_v, v, t, xt: unet_forward(cfg, t_v, v, t, xt))
    out = jax.block_until_ready(fwd(t_v, v, t, xt))

    assert out.shape == (N, in_channels, image_size, image_size), out.shape
    assert out.dtype == jnp.float32
    assert bool(jnp.all(jnp.isfinite(out)))
    print("KERNEL_OK")
</pallas_src>

<mosaic_0001>
module attributes {stable_mosaic.version = 11 : i64} {
  func.func @_flash_attn_kernel(%arg0: i32, %arg1: i32, %arg2: i32, %arg3: memref<1x16x192xbf16, #tpu.memory_space<vmem>>, %arg4: memref<1x16x192xbf16, #tpu.memory_space<vmem>>, %arg5: memref<1x16x64xbf16, #tpu.memory_space<vmem>>, %arg6: memref<1x16x1xf32, #tpu.memory_space<vmem>>, %arg7: memref<1x16x1xf32, #tpu.memory_space<vmem>>, %arg8: memref<1x16x64xf32, #tpu.memory_space<vmem>>) attributes {dimension_semantics = [#tpu.dimension_semantics<parallel>, #tpu.dimension_semantics<parallel>, #tpu.dimension_semantics<arbitrary>], iteration_bounds = array<i64: 2, 4, 4>, scalar_prefetch = 0 : i64, scratch_operands = 3 : i64, tpu.core_type = #tpu.core_type<tc>, window_params = [{transform_indices = @transform_0, window_bounds = array<i64: 1, 16, 192>}, {transform_indices = @transform_1, window_bounds = array<i64: 1, 16, 192>}, {transform_indices = @transform_2, window_bounds = array<i64: 1, 16, 64>}]} {
    %c0_i32 = arith.constant 0 : i32
    %0 = arith.cmpi eq, %arg2, %c0_i32 : i32
    %1 = arith.extui %0 : i1 to i32
    %c0_i32_0 = arith.constant 0 : i32
    %2 = arith.cmpi ne, %1, %c0_i32_0 : i32
    scf.if %2 {
      %cst_29 = arith.constant 0xFF800000 : f32
      %48 = vector.broadcast %cst_29 : f32 to vector<1x16x1xf32>
      %c0_30 = arith.constant 0 : index
      %c0_31 = arith.constant 0 : index
      %c0_32 = arith.constant 0 : index
      %49 = vector.load %arg6[%c0_30, %c0_31, %c0_32] : memref<1x16x1xf32, #tpu.memory_space<vmem>>, vector<1x16x1xf32>
      tpu.vector_store %arg6[%c0_30, %c0_31, %c0_32], %48 {strides = array<i32>} : memref<1x16x1xf32, #tpu.memory_space<vmem>>, vector<1x16x1xf32>,
      %cst_33 = arith.constant 0.000000e+00 : f32
      %50 = vector.broadcast %cst_33 : f32 to vector<1x16x1xf32>
      %c0_34 = arith.constant 0 : index
      %c0_35 = arith.constant 0 : index
      %c0_36 = arith.constant 0 : index
      %51 = vector.load %arg7[%c0_34, %c0_35, %c0_36] : memref<1x16x1xf32, #tpu.memory_space<vmem>>, vector<1x16x1xf32>
      tpu.vector_store %arg7[%c0_34, %c0_35, %c0_36], %50 {strides = array<i32>} : memref<1x16x1xf32, #tpu.memory_space<vmem>>, vector<1x16x1xf32>,
      %cst_37 = arith.constant 0.000000e+00 : f32
      %52 = vector.broadcast %cst_37 : f32 to vector<1x16x64xf32>
      %c0_38 = arith.constant 0 : index
      %c0_39 = arith.constant 0 : index
      %c0_40 = arith.constant 0 : index
      %53 = vector.load %arg8[%c0_38, %c0_39, %c0_40] : memref<1x16x64xf32, #tpu.memory_space<vmem>>, vector<1x16x64xf32>
      tpu.vector_store %arg8[%c0_38, %c0_39, %c0_40], %52 {strides = array<i32>} : memref<1x16x64xf32, #tpu.memory_space<vmem>>, vector<1x16x64xf32>,
    } else {
    }
    %c0 = arith.constant 0 : index
    %c0_1 = arith.constant 0 : index
    %c0_2 = arith.constant 0 : index
    %3 = vector.load %arg3[%c0, %c0_1, %c0_2] : memref<1x16x192xbf16, #tpu.memory_space<vmem>>, vector<1x16x192xbf16>
    %4 = vector.shape_cast %3 : vector<1x16x192xbf16> to vector<16x192xbf16>
    %c0_3 = arith.constant 0 : index
    %c0_4 = arith.constant 0 : index
    %c0_5 = arith.constant 0 : index
    %5 = vector.load %arg4[%c0_3, %c0_4, %c0_5] : memref<1x16x192xbf16, #tpu.memory_space<vmem>>, vector<1x16x192xbf16>
    %6 = vector.shape_cast %5 : vector<1x16x192xbf16> to vector<16x192xbf16>
    %7 = vector.extract_strided_slice %4 {offsets = [0, 0], sizes = [16, 64], strides = [1, 1]} : vector<16x192xbf16> to vector<16x64xbf16>
    %8 = vector.extract_strided_slice %6 {offsets = [0, 64], sizes = [16, 64], strides = [1, 1]} : vector<16x192xbf16> to vector<16x64xbf16>
    %9 = vector.extract_strided_slice %6 {offsets = [0, 128], sizes = [16, 64], strides = [1, 1]} : vector<16x192xbf16> to vector<16x64xbf16>
    %cst = arith.constant dense<0.000000e+00> : vector<16x16xf32>
    %10 = tpu.matmul %7, %8, %cst {dimension_numbers = #tpu.dot_dimension_numbers<[1], [1], [0], [0], [0, 0, 1, 0], [], []>} : vector<16x64xbf16>, vector<16x64xbf16>, vector<16x16xf32> -> vector<16x16xf32>
    %cst_6 = arith.constant 1.250000e-01 : f32
    %11 = vector.broadcast %cst_6 : f32 to vector<16x16xf32>
    %12 = arith.mulf %10, %11 : vector<16x16xf32>
    %c0_7 = arith.constant 0 : index
    %c0_8 = arith.constant 0 : index
    %c0_9 = arith.constant 0 : index
    %13 = vector.load %arg6[%c0_7, %c0_8, %c0_9] : memref<1x16x1xf32, #tpu.memory_space<vmem>>, vector<1x16x1xf32>
    %14 = vector.shape_cast %13 : vector<1x16x1xf32> to vector<16x1xf32>
    %cst_10 = arith.constant dense<0xFF800000> : vector<16xf32>
    %15 = vector.multi_reduction <maximumf>, %12, %cst_10 [1] : vector<16x16xf32> to vector<16xf32>
    %16 = vector.shape_cast %15 : vector<16xf32> to vector<16x1xf32>
    %17 = arith.maximumf %14, %16 : vector<16x1xf32>
    %18 = arith.subf %14, %17 : vector<16x1xf32>
    %19 = math.exp %18 : vector<16x1xf32>
    %20 = vector.broadcast %17 : vector<16x1xf32> to vector<16x16xf32>
    %21 = arith.subf %12, %20 : vector<16x16xf32>
    %22 = math.exp %21 : vector<16x16xf32>
    %c0_11 = arith.constant 0 : index
    %c0_12 = arith.constant 0 : index
    %c0_13 = arith.constant 0 : index
    %23 = vector.load %arg7[%c0_11, %c0_12, %c0_13] : memref<1x16x1xf32, #tpu.memory_space<vmem>>, vector<1x16x1xf32>
    %24 = vector.shape_cast %23 : vector<1x16x1xf32> to vector<16x1xf32>
    %25 = arith.mulf %19, %24 : vector<16x1xf32>
    %cst_14 = arith.constant dense<0.000000e+00> : vector<16xf32>
    %26 = vector.multi_reduction <add>, %22, %cst_14 [1] : vector<16x16xf32> to vector<16xf32>
    %27 = vector.shape_cast %26 : vector<16xf32> to vector<16x1xf32>
    %28 = arith.addf %25, %27 : vector<16x1xf32>
    %c0_15 = arith.constant 0 : index
    %c0_16 = arith.constant 0 : index
    %c0_17 = arith.constant 0 : index
    %29 = vector.load %arg7[%c0_15, %c0_16, %c0_17] : memref<1x16x1xf32, #tpu.memory_space<vmem>>, vector<1x16x1xf32>
    %30 = vector.shape_cast %29 : vector<1x16x1xf32> to vector<16x1xf32>
    %31 = vector.shape_cast %28 : vector<16x1xf32> to vector<1x16x1xf32>
    tpu.vector_store %arg7[%c0_15, %c0_16, %c0_17], %31 {strides = array<i32>} : memref<1x16x1xf32, #tpu.memory_space<vmem>>, vector<1x16x1xf32>,
    %c0_18 = arith.constant 0 : index
    %c0_19 = arith.constant 0 : index
    %c0_20 = arith.constant 0 : index
    %32 = vector.load %arg8[%c0_18, %c0_19, %c0_20] : memref<1x16x64xf32, #tpu.memory_space<vmem>>, vector<1x16x64xf32>
    %33 = vector.shape_cast %32 : vector<1x16x64xf32> to vector<16x64xf32>
    %34 = vector.broadcast %19 : vector<16x1xf32> to vector<16x64xf32>
    %35 = arith.mulf %34, %33 : vector<16x64xf32>
    %36 = arith.truncf %22 : vector<16x16xf32> to vector<16x16xbf16>
    %cst_21 = arith.constant dense<0.000000e+00> : vector<16x64xf32>
    %37 = tpu.matmul %36, %9, %cst_21 {dimension_numbers = #tpu.dot_dimension_numbers<[1], [0], [0], [1], [0, 0, 1, 1], [], []>} : vector<16x16xbf16>, vector<16x64xbf16>, vector<16x64xf32> -> vector<16x64xf32>
    %38 = arith.addf %35, %37 : vector<16x64xf32>
    %c0_22 = arith.constant 0 : index
    %c0_23 = arith.constant 0 : index
    %c0_24 = arith.constant 0 : index
    %39 = vector.load %arg8[%c0_22, %c0_23, %c0_24] : memref<1x16x64xf32, #tpu.memory_space<vmem>>, vector<1x16x64xf32>
    %40 = vector.shape_cast %39 : vector<1x16x64xf32> to vector<16x64xf32>
    %41 = vector.shape_cast %38 : vector<16x64xf32> to vector<1x16x64xf32>
    tpu.vector_store %arg8[%c0_22, %c0_23, %c0_24], %41 {strides = array<i32>} : memref<1x16x64xf32, #tpu.memory_space<vmem>>, vector<1x16x64xf32>,
    %c0_25 = arith.constant 0 : index
    %c0_26 = arith.constant 0 : index
    %c0_27 = arith.constant 0 : index
    %42 = vector.load %arg6[%c0_25, %c0_26, %c0_27] : memref<1x16x1xf32, #tpu.memory_space<vmem>>, vector<1x16x1xf32>
    %43 = vector.shape_cast %42 : vector<1x16x1xf32> to vector<16x1xf32>
    %44 = vector.shape_cast %17 : vector<16x1xf32> to vector<1x16x1xf32>
    tpu.vector_store %arg6[%c0_25, %c0_26, %c0_27], %44 {strides = array<i32>} : memref<1x16x1xf32, #tpu.memory_space<vmem>>, vector<1x16x1xf32>,
    %c3_i32 = arith.constant 3 : i32
    %45 = arith.cmpi eq, %arg2, %c3_i32 : i32
    %46 = arith.extui %45 : i1 to i32
    %c0_i32_28 = arith.constant 0 : i32
    %47 = arith.cmpi ne, %46, %c0_i32_28 : i32
    scf.if %47 {
      %c0_29 = arith.constant 0 : index
      %c0_30 = arith.constant 0 : index
      %c0_31 = arith.constant 0 : index
      %48 = vector.load %arg8[%c0_29, %c0_30, %c0_31] : memref<1x16x64xf32, #tpu.memory_space<vmem>>, vector<1x16x64xf32>
      %49 = vector.shape_cast %48 : vector<1x16x64xf32> to vector<16x64xf32>
      %c0_32 = arith.constant 0 : index
      %c0_33 = arith.constant 0 : index
      %c0_34 = arith.constant 0 : index
      %50 = vector.load %arg7[%c0_32, %c0_33, %c0_34] : memref<1x16x1xf32, #tpu.memory_space<vmem>>, vector<1x16x1xf32>
      %51 = vector.shape_cast %50 : vector<1x16x1xf32> to vector<16x1xf32>
      %52 = tpu.reciprocal %51 {approx = true} : vector<16x1xf32> -> vector<16x1xf32>
      %53 = vector.broadcast %52 : vector<16x1xf32> to vector<16x64xf32>
      %54 = arith.mulf %49, %53 : vector<16x64xf32>
      %55 = arith.truncf %54 : vector<16x64xf32> to vector<16x64xbf16>
      %c0_35 = arith.constant 0 : index
      %c0_36 = arith.constant 0 : index
      %c0_37 = arith.constant 0 : index
      %56 = vector.load %arg5[%c0_35, %c0_36, %c0_37] : memref<1x16x64xbf16, #tpu.memory_space<vmem>>, vector<1x16x64xbf16>
      %57 = vector.shape_cast %56 : vector<1x16x64xbf16> to vector<16x64xbf16>
      %58 = vector.shape_cast %55 : vector<16x64xbf16> to vector<1x16x64xbf16>
      tpu.vector_store %arg5[%c0_35, %c0_36, %c0_37], %58 {strides = array<i32>} : memref<1x16x64xbf16, #tpu.memory_space<vmem>>, vector<1x16x64xbf16>,
    } else {
    }
    return
  }
  func.func @transform_0(%arg0: i32, %arg1: i32, %arg2: i32) -> (i32, i32, i32) {
    %c0_i32 = arith.constant 0 : i32
    %c0_i32_0 = arith.constant 0 : i32
    return %arg0, %arg1, %c0_i32 : i32, i32, i32
  }
  func.func @transform_1(%arg0: i32, %arg1: i32, %arg2: i32) -> (i32, i32, i32) {
    %c0_i32 = arith.constant 0 : i32
    %c0_i32_0 = arith.constant 0 : i32
    return %arg0, %arg2, %c0_i32 : i32, i32, i32
  }
  func.func @transform_2(%arg0: i32, %arg1: i32, %arg2: i32) -> (i32, i32, i32) {
    %c0_i32 = arith.constant 0 : i32
    %c0_i32_0 = arith.constant 0 : i32
    return %arg0, %arg1, %c0_i32 : i32, i32, i32
  }
}

</mosaic_0001>

<llo_original>
// kernel: tpu_custom_call.1
$region0: #{tpu_custom_call.1}
  #allocation0 [shape = 'u32[]', space=smem, size = 0x4, offset = 0x4, fixed_abs, tag = 'smem constant byte address 0x4 - core index']
  #allocation1 [shape = 'u32[144,128]{1,0:T(1,128)}', space=vmem, size = 0x12000, scoped, tag = 'internal scratch']
  #allocation2 [shape = 'f32[1,16,1]{2,1,0:T(8,128)}', space=vmem, size = 0x2000, scoped, tag = 'scratch operand']
  #allocation3 [shape = 'f32[1,16,1]{2,1,0:T(8,128)}', space=vmem, size = 0x2000, scoped, tag = 'scratch operand']
  #allocation4 [shape = 'f32[1,16,64]{2,1,0:T(8,128)}', space=vmem, size = 0x2000, scoped, tag = 'scratch operand']
  %s0 = inlined_call_operand.hbm [shape: bf16[2,64,192], index: 0, kind: input, shape index: {}]
  %s1 = inlined_call_operand.hbm [shape: bf16[2,64,192], index: 1, kind: input, shape index: {}]
  %s2 = inlined_call_operand.hbm [shape: bf16[2,64,64], index: 2, kind: output, shape index: {}]
  %s3 = sld [smem:[#allocation0]]
  $region57: #{tpu_custom_call.1} parent=0
    _
  %s5 = ssub.s32 1, %s3
  %s6 = scalar_select 0, %s5, %s3
  $region1: #{tpu_custom_call.1} parent=0
    #allocation5 [shape = 'u8[16384]{0}', space=vmem, size = 0x4000, scoped, tag = 'input window, operand 0']
    #allocation6 [shape = 's32[2]{0}', space=sflag, size = 0x8, scoped, tag = 'scoped memory for tpu_custom_call.1']
    #allocation7 [shape = 's32[2]{0}', space=sflag, size = 0x8, scoped, tag = 'scoped memory for tpu_custom_call.1']
    #allocation8 [shape = 'u8[16384]{0}', space=vmem, size = 0x4000, scoped, tag = 'input window, operand 1']
    #allocation9 [shape = 's32[2]{0}', space=sflag, size = 0x8, scoped, tag = 'scoped memory for tpu_custom_call.1']
    #allocation10 [shape = 'u8[8192]{0}', space=vmem, size = 0x2000, scoped, tag = 'output window, operand 0']
    %7 = vsyncpa [#allocation6], 0
    %s8 = scalar_lea.sflag [#allocation6], 1
    %9 = vsyncpa %s8, 0
    %10 = vsyncpa [#allocation9], 0
    %s11 = scalar_lea.sflag [#allocation9], 1
    %12 = vsyncpa %s11, 0
    %13 = vsyncpa [#allocation7], 0
    %s14 = scalar_lea.sflag [#allocation7], 1
    %15 = vsyncpa %s14, 0
    loop: start=0, step=1, limit=34
    $region2: #{tpu_custom_call.1} parent=1 // loop_pre_header
      _
    $region3: #{tpu_custom_call.1} parent=1 // loop_header
      %s17 = sphi 0, %s21
      %p18 = scmp.ge.s32.totalorder %s17, 34
      %s24 = sphi 0, %s43
      %s25 = sphi 0, %s39
      %s26 = sphi 0, %s35
      %s27 = sphi 0, %s24
      %s28 = sphi 0, %s25
      %s29 = sphi 0, %s26
      %s30 = sphi 0, %s27
      %s31 = sphi 0, %s28
      %s32 = sphi 0, %s29
      %s48 = sphi 0, %s50
      %s51 = sphi 0, %s48
      %s52 = sphi 0, %s51
      %s68 = sphi 0, %s52
      %s76 = sphi 0, %s78
      %s79 = sphi 0, %s76
      %s80 = sphi 0, %s79
      %s96 = sphi 0, %s80
      %s104 = sphi 0, %s106
      %s107 = sphi 0, %s104
      %s108 = sphi 0, %s107
      %s124 = sphi 0, %s108
    $region4: #{tpu_custom_call.1} parent=1 // loop_header_branch
      %20 = sbr.rel (%p18) target = $region8
    $region5: #{tpu_custom_call.1} parent=1 // loop_body
      %s22 = ssub.s32 %s17, 1
      %s23 = ssub.s32 %s17, 2
      %s33 = sadd.s32 1, %s26
      %p34 = scmp.ge.s32.totalorder %s33, 4
      %s35 = scalar_select %p34, 0, %s33
      %s36 = sadd.s32 1, %s25
      %s37 = scalar_select %p34, %s36, %s25
      %p38 = scmp.ge.s32.totalorder %s37, 4
      %s39 = scalar_select %p38, 0, %s37
      %s40 = sadd.s32 1, %s24
      %s41 = scalar_select %p38, %s40, %s24
      %p42 = scmp.ge.s32.totalorder %s41, 2
      %s43 = scalar_select %p42, 0, %s41
      %s44 = ssub.s32 %s24, %s43
      %s45 = ssub.s32 %s25, %s39
      %s46 = sor.u32 %s44, %s45
      %p47 = scmp.eq.s32.totalorder %s46, 0
      %s49 = sadd.s32 %s48, 1
      %s50 = scalar_select %p47, %s48, %s49
      %p53 = pneg %p47
      %p54 = scmp.eq.s32.totalorder %s17, 31
      %p55 = por %p53, %p54
      %p56 = scmp.ne.s32.totalorder %s48, %s51
      %p57 = scmp.eq.s32.totalorder %s17, 0
      %p58 = por %p56, %p57
      %p59 = scmp.ne.s32.totalorder %s48, %s51
      %p60 = scmp.eq.s32.totalorder %s22, 31
      %p61 = por %p59, %p60
      %p62 = scmp.ne.s32.totalorder %s51, %s52
      %p63 = scmp.eq.s32.totalorder %s22, 0
      %p64 = por %p62, %p63
      %p65 = scmp.ne.s32.totalorder %s51, %s52
      %p66 = scmp.eq.s32.totalorder %s23, 31
      %p67 = por %p65, %p66
      %p69 = scmp.ne.s32.totalorder %s52, %s68
      %p70 = scmp.eq.s32.totalorder %s23, 0
      %p71 = por %p69, %p70
      %s72 = ssub.s32 %s24, %s43
      %s73 = ssub.s32 %s26, %s35
      %s74 = sor.u32 %s72, %s73
      %p75 = scmp.eq.s32.totalorder %s74, 0
      %s77 = sadd.s32 %s76, 1
      %s78 = scalar_select %p75, %s76, %s77
      %p81 = pneg %p75
      %p82 = scmp.eq.s32.totalorder %s17, 31
      %p83 = por %p81, %p82
      %p84 = scmp.ne.s32.totalorder %s76, %s79
      %p85 = scmp.eq.s32.totalorder %s17, 0
      %p86 = por %p84, %p85
      %p87 = scmp.ne.s32.totalorder %s76, %s79
      %p88 = scmp.eq.s32.totalorder %s22, 31
      %p89 = por %p87, %p88
      %p90 = scmp.ne.s32.totalorder %s79, %s80
      %p91 = scmp.eq.s32.totalorder %s22, 0
      %p92 = por %p90, %p91
      %p93 = scmp.ne.s32.totalorder %s79, %s80
      %p94 = scmp.eq.s32.totalorder %s23, 31
      %p95 = por %p93, %p94
      %p97 = scmp.ne.s32.totalorder %s80, %s96
      %p98 = scmp.eq.s32.totalorder %s23, 0
      %p99 = por %p97, %p98
      %s100 = ssub.s32 %s24, %s43
      %s101 = ssub.s32 %s25, %s39
      %s102 = sor.u32 %s100, %s101
      %p103 = scmp.eq.s32.totalorder %s102, 0
      %s105 = sadd.s32 %s104, 1
      %s106 = scalar_select %p103, %s104, %s105
      %p109 = pneg %p103
      %p110 = scmp.eq.s32.totalorder %s17, 31
      %p111 = por %p109, %p110
      %p112 = scmp.ne.s32.totalorder %s104, %s107
      %p113 = scmp.eq.s32.totalorder %s17, 0
      %p114 = por %p112, %p113
      %p115 = scmp.ne.s32.totalorder %s104, %s107
      %p116 = scmp.eq.s32.totalorder %s22, 31
      %p117 = por %p115, %p116
      %p118 = scmp.ne.s32.totalorder %s107, %s108
      %p119 = scmp.eq.s32.totalorder %s22, 0
      %p120 = por %p118, %p119
      %p121 = scmp.ne.s32.totalorder %s107, %s108
      %p122 = scmp.eq.s32.totalorder %s23, 31
      %p123 = por %p121, %p122
      %p125 = scmp.ne.s32.totalorder %s108, %s124
      %p126 = scmp.eq.s32.totalorder %s23, 0
      %p127 = por %p125, %p126
      %p128 = scmp.le.s32.totalorder 1, %s17
      %p129 = scmp.lt.s32.totalorder %s17, 33
      %p130 = pnand %p128, %p129
      %p131 = pneg %p130
      // Predicated region
      $region9: #{tpu_custom_call.1} parent=5 // pred_check
        _
      $region10: #{tpu_custom_call.1} parent=5 // pred_check_branch
        %133 = sbr.rel (%p130) target = $region12
      $region11: #{tpu_custom_call.1} parent=5 // pred_region
        %s134 = ssub.s32 %s17, 1
      $region12: #{tpu_custom_call.1} parent=5 // pred_fallthru
        _
      %p135 = scmp.lt.s32.totalorder %s17, 32
      // Predicated region
      $region13: #{tpu_custom_call.1} parent=5 // pred_check
        %p136 = pneg %p135
      $region14: #{tpu_custom_call.1} parent=5 // pred_check_branch
        %138 = sbr.rel (%p136) target = $region16
      $region15: #{tpu_custom_call.1} parent=5 // pred_region
        // Predicated region
        $region17: #{tpu_custom_call.1} parent=15 // pred_check
          %p139 = pneg %p58
        $region18: #{tpu_custom_call.1} parent=15 // pred_check_branch
          %141 = sbr.rel (%p139) target = $region20
        $region19: #{tpu_custom_call.1} parent=15 // pred_region
          %s142 = sand.u32 %s48, 1
          %s143 = scalar_lea.sflag [#allocation6], %s142
          %s144 = sand.u32 %s48, 1
          %s145 = smul.addr %s144, 16
          %s146 = scalar_lea.vmem [#allocation5], %s145
          %s147 = smul.u32 2, %s25
          %s149 = ssub.s32 256, 256
          %150 = vsyncadd %s143, %s149
          %s151 = smul.addr %s147, 2
          %s152 = smul.addr %s24, 16
          %s153 = sadd.s32 %s151, %s152
          %s154 = smul.addr %s153, 64
          %s155 = scalar_lea.hbm %s0, %s154
          %s156 = sshll.u32 %s146, 4
          %s157 = int_to_ptr.vmem [resolvable:$true] %s156
          %162 = dma.hbm_to_vmem [thread:$0]  %s155, 256, %s157, %s143, 128, 128, 8
        $region20: #{tpu_custom_call.1} parent=15 // pred_fallthru
          _
        // Predicated region
        $region21: #{tpu_custom_call.1} parent=15 // pred_check
          %p163 = pneg %p86
        $region22: #{tpu_custom_call.1} parent=15 // pred_check_branch
          %165 = sbr.rel (%p163) target = $region24
        $region23: #{tpu_custom_call.1} parent=15 // pred_region
          %s166 = sand.u32 %s76, 1
          %s167 = scalar_lea.sflag [#allocation9], %s166
          %s168 = sand.u32 %s76, 1
          %s169 = smul.addr %s168, 16
          %s170 = scalar_lea.vmem [#allocation8], %s169
          %s171 = smul.u32 2, %s26
          %s173 = ssub.s32 256, 256
          %174 = vsyncadd %s167, %s173
          %s175 = smul.addr %s171, 2
          %s176 = smul.addr %s24, 16
          %s177 = sadd.s32 %s175, %s176
          %s178 = smul.addr %s177, 64
          %s179 = scalar_lea.hbm %s1, %s178
          %s180 = sshll.u32 %s170, 4
          %s181 = int_to_ptr.vmem [resolvable:$true] %s180
          %186 = dma.hbm_to_vmem [thread:$0]  %s179, 256, %s181, %s167, 128, 128, 8
        $region24: #{tpu_custom_call.1} parent=15 // pred_fallthru
          _
      $region16: #{tpu_custom_call.1} parent=5 // pred_fallthru
        _
      %p187 = scmp.le.s32.totalorder 1, %s17
      %p188 = scmp.lt.s32.totalorder %s17, 33
      %p189 = pnand %p187, %p188
      %p190 = pneg %p189
      // Predicated region
      $region25: #{tpu_custom_call.1} parent=5 // pred_check
        _
      $region26: #{tpu_custom_call.1} parent=5 // pred_check_branch
        %192 = sbr.rel (%p189) target = $region28
      $region27: #{tpu_custom_call.1} parent=5 // pred_region
        %s193 = ssub.s32 %s17, 1
        %s194 = sand.u32 %s51, 1
        %s195 = scalar_lea.sflag [#allocation6], %s194
        %s196 = sand.u32 %s51, 1
        %s197 = smul.addr %s196, 16
        %s198 = scalar_lea.vmem [#allocation5], %s197
        // Predicated region
        $region29: #{tpu_custom_call.1} parent=27 // pred_check
          %p199 = pneg %p64
        $region30: #{tpu_custom_call.1} parent=27 // pred_check_branch
          %201 = sbr.rel (%p199) target = $region32
        $region31: #{tpu_custom_call.1} parent=27 // pred_region
          %202 = dma.done %s195, 256
        $region32: #{tpu_custom_call.1} parent=27 // pred_fallthru
          _
        %s203 = sand.u32 %s79, 1
        %s204 = scalar_lea.sflag [#allocation9], %s203
        %s205 = sand.u32 %s79, 1
        %s206 = smul.addr %s205, 16
        %s207 = scalar_lea.vmem [#allocation8], %s206
        // Predicated region
        $region33: #{tpu_custom_call.1} parent=27 // pred_check
          %p208 = pneg %p92
        $region34: #{tpu_custom_call.1} parent=27 // pred_check_branch
          %210 = sbr.rel (%p208) target = $region36
        $region35: #{tpu_custom_call.1} parent=27 // pred_region
          %211 = dma.done %s204, 256
        $region36: #{tpu_custom_call.1} parent=27 // pred_fallthru
          _
        %s212 = sand.u32 %s51, 1
        %s213 = scalar_lea.sflag [#allocation6], %s212
        %s214 = sand.u32 %s51, 1
        %s215 = smul.addr %s214, 16
        %s216 = scalar_lea.vmem [#allocation5], %s215
        %p217 = pneg %p64
        %p218 = pneg %p61
        %s219 = sand.u32 %s79, 1
        %s220 = scalar_lea.sflag [#allocation9], %s219
        %s221 = sand.u32 %s79, 1
        %s222 = smul.addr %s221, 16
        %s223 = scalar_lea.vmem [#allocation8], %s222
        %p224 = pneg %p92
        %p225 = pneg %p89
        %p226 = pneg %p120
        %p227 = pneg %p117
        %s228 = sand.u32 %s107, 1
        %s229 = scalar_lea.sflag [#allocation7], %s228
        %s230 = sand.u32 %s107, 1
        %s231 = smul.addr %s230, 8
        %s232 = scalar_lea.vmem [#allocation10], %s231
        %s233 = smul.u32 2, %s28
        %s234 = smul.u32 2, %s29
        %s235 = smul.u32 2, %s28
        %p237 = scmp.eq.s32.totalorder %s29, 0
        // Predicated region
        $region37: #{tpu_custom_call.1} parent=27 // pred_check
          %p238 = pneg %p237
        $region38: #{tpu_custom_call.1} parent=27 // pred_check_branch
          %240 = sbr.rel (%p238) target = $region40
        $region39: #{tpu_custom_call.1} parent=27 // pred_region
          %vm241 = vcmask 7168
          %242 = vst.msk [vmem:[#allocation2] sm:$0xff] %vm241, -inf
          %243 = vst.msk [vmem:[#allocation2 + $0x8] sm:$0xff] %vm241, -inf
          %244 = vst.msk [vmem:[#allocation3] sm:$0xff] %vm241, 0.0
          %245 = vst.msk [vmem:[#allocation3 + $0x8] sm:$0xff] %vm241, 0.0
          %vm246 = vcmask 523264
          %247 = vst.msk [vmem:[#allocation4] sm:$0xff] %vm246, 0.0
          %248 = vst.msk [vmem:[#allocation4 + $0x8] sm:$0xff] %vm246, 0.0
        $region40: #{tpu_custom_call.1} parent=27 // pred_fallthru
          _
        %v249 = vld [vmem:[%s198] sm:$0xff]
        %v250 = vld [vmem:[%s198 + $0x8] sm:$0xff]
        %v251 = vld [vmem:[%s207] sm:$0xff]
        %v252 = vld [vmem:[%s207 + $0x8] sm:$0xff]
        %v255 = vunpack.c.l.b16 %v249
        %v256 = vunpack.c.l.b16 %v250
        %v257 = vpack.c.b16 %v256, %v255
        %v260 = vunpack.c.l.b16 %v251
        %v261 = vunpack.c.l.b16 %v252
        %v262 = vpack.c.b16 %v261, %v260
        %263 = vrot.lane.b32.xlu0 %v262, 64
        %v264 = vpop.permute.xlu0 %263
        %vm265 = vcmask 523264
        %v267 = vsel %vm265, %v257, 0
        %v270 = vsel %vm265, %v264, 0
        %272 = vmatprep.subr.bf16.mxu0 0
        %273 = vmatpush1.bf16.xpose.msra.mxu0 0
        %274 = vmatprep.subr.bf16.mxu0 0
        %275 = vmatpush1.bf16.xpose.msra.mxu0 0
        %276 = vmatprep.subr.bf16.mxu0 0
        %277 = vmatpush1.bf16.xpose.msra.mxu0 0
        %278 = vmatprep.subr.bf16.mxu0 0
        %279 = vmatpush1.bf16.xpose.msra.mxu0 0
        %280 = vmatprep.subr.bf16.mxu0 0
        %281 = vmatpush1.bf16.xpose.msra.mxu0 0
        %282 = vmatprep.subr.bf16.mxu0 0
        %283 = vmatpush1.bf16.xpose.msra.mxu0 0
        %284 = vmatprep.subr.bf16.mxu0 0
        %285 = vmatpush1.bf16.xpose.msra.mxu0 0
        %286 = vmatprep.subr.bf16.mxu0 0
        %287 = vmatpush1.bf16.xpose.msra.mxu0 %v270
        %288 = vmatprep.subr.bf16.mxu0 0
        %289 = vmatpush2.bf16.xpose.msra.mxu0 0
        %290 = vmatprep.subr.bf16.mxu0 0
        %291 = vmatpush2.bf16.xpose.msra.mxu0 0
        %292 = vmatprep.subr.bf16.mxu0 0
        %293 = vmatpush2.bf16.xpose.msra.mxu0 0
        %294 = vmatprep.subr.bf16.mxu0 0
        %295 = vmatpush2.bf16.xpose.msra.mxu0 0
        %296 = vmatprep.subr.bf16.mxu0 0
        %297 = vmatpush2.bf16.xpose.msra.mxu0 0
        %298 = vmatprep.subr.bf16.mxu0 0
        %299 = vmatpush2.bf16.xpose.msra.mxu0 0
        %300 = vmatprep.subr.bf16.mxu0 0
        %301 = vmatpush2.bf16.xpose.msra.mxu0 0
        %302 = vmatprep.subr.bf16.mxu0 0
        %303 = vmatpush2.bf16.xpose.msra.mxu0 0
        %304 = vmatprep.mubr.bf16.mxu0 0
        %305 = vmatmul.mubr.bf16.gmra.mxu0 %v267
        %v306 = vpop.f32.mrf.mxu0
        %v307 = vadd.f32 0.0, %v306
        %v308 = vpop.f32.mrf.mxu0
        %v309 = vpop.f32.mrf.mxu0
        %v310 = vadd.f32 0.0, %v309
        %v311 = vpop.f32.mrf.mxu0
        %312 = vdwg.mxu0
        %v313 = vmul.f32 %v307, 0.125
        %v314 = vmul.f32 %v310, 0.125
        %v315 = vld [vmem:[#allocation2] sm:$0xff]
        %v316 = vld [vmem:[#allocation2 + $0x8] sm:$0xff]
        %vm317 = vcmask 130048
        %v318 = vsel %vm317, %v313, -inf
        %319 = vmax.xlane.f32.xlu0 %v318
        %v320 = vpop.xlane.xlu0 %319
        %v321 = vsel %vm317, %v314, -inf
        %322 = vmax.xlane.f32.xlu0 %v321
        %v323 = vpop.xlane.xlu0 %322
        %v324 = vmax.f32 %v315, %v320
        %v325 = vmax.f32 %v316, %v323
        %v326 = vsub.f32 %v315, %v324
        %v327 = vsub.f32 %v316, %v325
        %v328 = vmul.f32 %v326, 1.442695
        %v329 = vpow.pop %v328
        %v330 = vmul.f32 %v327, 1.442695
        %v331 = vpow.pop %v330
        %333 = vset.pattern.permute.xlu0 0
        %334 = vperm.xlu0 %333, %v324
        %v335 = vpop.permute.xlu0 %334
        %338 = vset.pattern.permute.xlu0 0
        %339 = vperm.xlu0 %338, %v325
        %v340 = vpop.permute.xlu0 %339
        %v342 = vsub.f32 %v313, %v335
        %v343 = vsub.f32 %v314, %v340
        %v344 = vmul.f32 %v342, 1.442695
        %v345 = vpow.pop %v344
        %v346 = vmul.f32 %v343, 1.442695
        %v347 = vpow.pop %v346
        %v348 = vld [vmem:[#allocation3] sm:$0xff]
        %v349 = vld [vmem:[#allocation3 + $0x8] sm:$0xff]
        %v350 = vmul.f32 %v329, %v348
        %v351 = vmul.f32 %v331, %v349
        %v352 = vsel %vm317, %v345, 0.0
        %353 = vadd.xlane.f32.xlu0 %v352
        %v354 = vpop.xlane.xlu0 %353
        %v355 = vsel %vm317, %v347, 0.0
        %356 = vadd.xlane.f32.xlu0 %v355
        %v357 = vpop.xlane.xlu0 %356
        %v358 = vadd.f32 %v350, %v354
        %v359 = vadd.f32 %v351, %v357
        %vm360 = vcmask 7168
        %361 = vst.msk [vmem:[#allocation3] sm:$0xff] %vm360, %v358
        %362 = vst.msk [vmem:[#allocation3 + $0x8] sm:$0xff] %vm360, %v359
        %v363 = vld [vmem:[#allocation4] sm:$0xff]
        %v364 = vld [vmem:[#allocation4 + $0x8] sm:$0xff]
        %366 = vset.pattern.permute.xlu0 0
        %367 = vperm.xlu0 %366, %v329
        %v368 = vpop.permute.xlu0 %367
        %371 = vset.pattern.permute.xlu0 0
        %372 = vperm.xlu0 %371, %v331
        %v373 = vpop.permute.xlu0 %372
        %v375 = vmul.f32 %v368, %v363
        %v376 = vmul.f32 %v373, %v364
        %v377 = vpack.c.bf16 %v347, %v345
        %v378 = vunpack.c.h.b16 %v251
        %v379 = vunpack.c.h.b16 %v252
        %v380 = vpack.c.b16 %v379, %v378
        %v383 = vsel %vm317, %v377, 0
        %385 = vmatprep.subr.bf16.mxu0 0
        %386 = vmatpush1.bf16.msra.mxu0 0
        %387 = vmatprep.subr.bf16.mxu0 0
        %388 = vmatpush1.bf16.msra.mxu0 0
        %389 = vmatprep.subr.bf16.mxu0 0
        %390 = vmatpush1.bf16.msra.mxu0 0
        %391 = vmatprep.subr.bf16.mxu0 0
        %392 = vmatpush1.bf16.msra.mxu0 0
        %393 = vmatprep.subr.bf16.mxu0 0
        %394 = vmatpush1.bf16.msra.mxu0 0
        %395 = vmatprep.subr.bf16.mxu0 0
        %396 = vmatpush1.bf16.msra.mxu0 0
        %397 = vmatprep.subr.bf16.mxu0 0
        %398 = vmatpush1.bf16.msra.mxu0 0
        %399 = vmatprep.subr.bf16.mxu0 0
        %400 = vmatpush1.bf16.msra.mxu0 %v380
        %401 = vmatprep.subr.bf16.mxu0 0
        %402 = vmatpush2.bf16.msra.mxu0 0
        %403 = vmatprep.subr.bf16.mxu0 0
        %404 = vmatpush2.bf16.msra.mxu0 0
        %405 = vmatprep.subr.bf16.mxu0 0
        %406 = vmatpush2.bf16.msra.mxu0 0
        %407 = vmatprep.subr.bf16.mxu0 0
        %408 = vmatpush2.bf16.msra.mxu0 0
        %409 = vmatprep.subr.bf16.mxu0 0
        %410 = vmatpush2.bf16.msra.mxu0 0
        %411 = vmatprep.subr.bf16.mxu0 0
        %412 = vmatpush2.bf16.msra.mxu0 0
        %413 = vmatprep.subr.bf16.mxu0 0
        %414 = vmatpush2.bf16.msra.mxu0 0
        %415 = vmatprep.subr.bf16.mxu0 0
        %416 = vmatpush2.bf16.msra.mxu0 0
        %417 = vmatprep.mubr.bf16.mxu0 0
        %418 = vmatmul.mubr.bf16.gmra.mxu0 %v383
        %v419 = vpop.f32.mrf.mxu0
        %v420 = vadd.f32 0.0, %v419
        %v421 = vpop.f32.mrf.mxu0
        %v422 = vpop.f32.mrf.mxu0
        %v423 = vadd.f32 0.0, %v422
        %v424 = vpop.f32.mrf.mxu0
        %425 = vdwg.mxu0
        %v426 = vadd.f32 %v375, %v420
        %v427 = vadd.f32 %v376, %v423
        %428 = vst.msk [vmem:[#allocation4] sm:$0xff] %vm265, %v426
        %429 = vst.msk [vmem:[#allocation4 + $0x8] sm:$0xff] %vm265, %v427
        %430 = vst.msk [vmem:[#allocation2] sm:$0xff] %vm360, %v324
        %431 = vst.msk [vmem:[#allocation2 + $0x8] sm:$0xff] %vm360, %v325
        %p432 = scmp.eq.s32.totalorder %s29, 3
        // Predicated region
        $region41: #{tpu_custom_call.1} parent=27 // pred_check
          %p433 = pneg %p432
        $region42: #{tpu_custom_call.1} parent=27 // pred_check_branch
          %435 = sbr.rel (%p433) target = $region44
        $region43: #{tpu_custom_call.1} parent=27 // pred_region
          %v436 = vld [vmem:[#allocation4] sm:$0xff]
          %v437 = vld [vmem:[#allocation4 + $0x8] sm:$0xff]
          %v438 = vld [vmem:[#allocation3] sm:$0xff]
          %v439 = vld [vmem:[#allocation3 + $0x8] sm:$0xff]
          %v440 = vrcp.pop %v438
          %v441 = vrcp.pop %v439
          %443 = vset.pattern.permute.xlu0 0
          %444 = vperm.xlu0 %443, %v440
          %v445 = vpop.permute.xlu0 %444
          %448 = vset.pattern.permute.xlu0 0
          %449 = vperm.xlu0 %448, %v441
          %v450 = vpop.permute.xlu0 %449
          %v452 = vmul.f32 %v436, %v445
          %v453 = vmul.f32 %v437, %v450
          %v454 = vpack.c.bf16 %v453, %v452
          %v456 = vunpack.c.l.b16 %v454
          %v457 = vunpack.c.h.b16 %v454
          %v458 = vpack.c.b16 %v456, %v456
          %v459 = vpack.c.b16 %v457, %v457
          %vm462 = vcmask 519168
          %463 = vst.msk [vmem:[%s232] sm:$0xf] %vm462, %v458
          %464 = vst.msk [vmem:[%s232 + $0x4] sm:$0xf] %vm462, %v459
        $region44: #{tpu_custom_call.1} parent=27 // pred_fallthru
          _
        %s465 = sand.u32 %s107, 1
        %s466 = scalar_lea.sflag [#allocation7], %s465
        %s467 = sand.u32 %s107, 1
        %s468 = smul.addr %s467, 8
        %s469 = scalar_lea.vmem [#allocation10], %s468
        // Predicated region
        $region45: #{tpu_custom_call.1} parent=27 // pred_check
          %p470 = pneg %p117
        $region46: #{tpu_custom_call.1} parent=27 // pred_check_branch
          %472 = sbr.rel (%p470) target = $region48
        $region47: #{tpu_custom_call.1} parent=27 // pred_region
          %s473 = smul.u32 2, %s28
          %s475 = ssub.s32 128, 128
          %476 = vsyncadd %s466, %s475
          %s477 = smul.addr %s27, 8
          %s478 = sadd.s32 %s473, %s477
          %s479 = smul.addr %s478, 64
          %s480 = scalar_lea.hbm %s2, %s479
          %s481 = sshll.u32 %s469, 4
          %s482 = int_to_ptr.vmem [resolvable:$true] %s481
          %487 = dma.vmem_to_hbm [thread:$0]  %s482, 128, %s480, %s466, 64, 64, 4
        $region48: #{tpu_custom_call.1} parent=27 // pred_fallthru
          _
      $region28: #{tpu_custom_call.1} parent=5 // pred_fallthru
        _
      %p488 = scmp.le.s32.totalorder 2, %s17
      // Predicated region
      $region49: #{tpu_custom_call.1} parent=5 // pred_check
        %p489 = pneg %p488
      $region50: #{tpu_custom_call.1} parent=5 // pred_check_branch
        %491 = sbr.rel (%p489) target = $region52
      $region51: #{tpu_custom_call.1} parent=5 // pred_region
        %s492 = ssub.s32 %s17, 2
        // Predicated region
        $region53: #{tpu_custom_call.1} parent=51 // pred_check
          %p493 = pneg %p123
        $region54: #{tpu_custom_call.1} parent=51 // pred_check_branch
          %495 = sbr.rel (%p493) target = $region56
        $region55: #{tpu_custom_call.1} parent=51 // pred_region
          %s496 = sand.u32 %s108, 1
          %s497 = scalar_lea.sflag [#allocation7], %s496
          %s498 = sand.u32 %s108, 1
          %s499 = smul.addr %s498, 8
          %s500 = scalar_lea.vmem [#allocation10], %s499
          %501 = dma.done %s497, 128
        $region56: #{tpu_custom_call.1} parent=51 // pred_fallthru
          _
      $region52: #{tpu_custom_call.1} parent=5 // pred_fallthru
        _
    $region6: #{tpu_custom_call.1} parent=1 // loop_footer
      %s21 = sadd.s32 1, %s17
    $region7: #{tpu_custom_call.1} parent=1 // loop_footer_branch
      %16 = sbr.rel target = $region3
    $region8: #{tpu_custom_call.1} parent=1 // loop_exit
      _
    %502 = vsyncpa [#allocation6], 1
    %s503 = scalar_lea.sflag [#allocation6], 1
    %504 = vsyncpa %s503, 1
    %505 = vsyncpa [#allocation9], 1
    %s506 = scalar_lea.sflag [#allocation9], 1
    %507 = vsyncpa %s506, 1
    %508 = vsyncpa [#allocation7], 1
    %s509 = scalar_lea.sflag [#allocation7], 1
    %510 = vsyncpa %s509, 1

</llo_original>
